<compile_context>
chip_gen: v7x
topology: tpu7x:2x2x1
jax: 0.10.0
libtpu: 0.0.40
codegen_flags: <defaults>
</compile_context>

<pallas_src>
import functools

import jax
import jax.numpy as jnp
from jax.experimental import pallas as pl
from jax.experimental.pallas import tpu as pltpu

K = 3  # ConvCompress uses kernel_size == stride == 3


def _round_up(x, m):
    return (x + m - 1) // m * m


def conv_compress_kernel(x_ref, w_ref, b_ref, o_ref, *, compute_dtype):
    # x_ref: (TILE_M, K*D) unrolled windows; w_ref: (K*D, TILE_N); b_ref: (1, TILE_N)
    x = x_ref[...]
    w = w_ref[...]
    if compute_dtype is not None:
        # bf16 operands -> higher MXU throughput (esp. v5e); accumulate in f32.
        if x.dtype != compute_dtype:
            x = x.astype(compute_dtype)
        if w.dtype != compute_dtype:
            w = w.astype(compute_dtype)
    acc = jnp.dot(x, w, preferred_element_type=jnp.float32)
    o_ref[...] = (acc + b_ref[...].astype(jnp.float32)).astype(o_ref.dtype)


def prepare_conv_params(conv_weight, conv_bias, *, weight_dtype=None):
    """Hoist per-weight work out of the per-call hot path.

    conv_weight: (D, D, K) PyTorch Conv1d layout (out_ch, in_ch, k)
    conv_bias:   (D,)
    Only the *output*-channel dim is padded to a multiple of 128 (Dp) so the
    kernel's output stores are lane-dense; the activation/contraction dim stays
    K*D (no activation padding needed).
      w_mat: (K*D, Dp) with w_mat[k*D + ci, co] = conv_weight[co, ci, k]
      b_row: (1, Dp)
    """
    D = conv_weight.shape[0]
    Dp = _round_up(D, 128)
    w = jnp.transpose(conv_weight, (2, 1, 0))  # (K, ci, co)
    b = conv_bias
    if Dp != D:
        w = jnp.pad(w, ((0, 0), (0, 0), (0, Dp - D)))
        b = jnp.pad(b, (0, Dp - D))
    w = w.reshape(K * D, Dp)
    if weight_dtype is not None:
        w = w.astype(weight_dtype)
    return w, b.reshape(1, Dp)


def conv_compress_prepared(mem, w_mat, b_row, *, tile_m=None, tile_n=None,
                           compute_dtype=None, out_dtype=None,
                           vmem_fraction=0.75):
    """ConvCompress.forward with pre-prepared weights.

    mem:   (B, L, D)        (the layout ConvCompress.forward receives)
    w_mat: (K*D, Dp)        from prepare_conv_params
    b_row: (1, Dp)
    returns (B, L_out, D) with L_out = (L - 3)//3 + 1
    """
    B, L, D = mem.shape
    KD, Dp = w_mat.shape
    assert KD == K * D, f"w_mat first dim {KD} != K*D={K * D}"
    assert Dp % 128 == 0 and Dp >= D

    out_dtype = jnp.dtype(out_dtype) if out_dtype is not None else jnp.dtype(mem.dtype)
    L_out = (L - K) // K + 1 if L >= K else 0
    M = B * L_out
    if M == 0:  # L < 3: empty output, nothing to do
        return jnp.zeros((B, 0, D), dtype=out_dtype)

    # TODO(synk): when L % 3 != 0 this slice is an extra HBM pass over the
    # activations; handle the time tail upstream (or grid over (B, time-tile)
    # with strided reads) to avoid it on the mem-bound path.
    if L_out * K != L:
        mem = mem[:, : L_out * K, :]
    x = mem.reshape(M, K * D)  # pure reshape of a contiguous array

    in_isz = jnp.dtype(mem.dtype).itemsize
    w_isz = jnp.dtype(w_mat.dtype).itemsize
    out_isz = out_dtype.itemsize

    # --- generation-aware VMEM budget (v7x: 64 MiB/TC, v5e/v6e: 128 MiB) -----
    try:
        vmem_cap = int(pltpu.get_tpu_info().vmem_capacity_bytes)
    except Exception:
        vmem_cap = 64 * 1024 * 1024  # conservative (v7x-sized) fallback
    budget = int(vmem_cap * float(vmem_fraction))

    # --- N (output-channel) tiling: weights resident if they fit, else tile --
    w_full_bytes = KD * Dp * w_isz
    if tile_n is not None:
        tn = min(_round_up(int(tile_n), 128), Dp)
    elif w_full_bytes <= budget // 3:
        tn = Dp  # full weight matrix stays resident in VMEM
    else:
        tn = ((budget // 3) // (2 * KD * w_isz)) // 256 * 256  # MXU-wide tiles
        tn = max(128, min(tn, Dp))
    n_tiles = pl.cdiv(Dp, tn)
    weights_resident = (tn == Dp)

    # Resident weight/bias blocks have a constant index map -> a second buffer
    # only wastes VMEM. Single-buffer them when they are big (matters on v7x).
    single_buffer_w = weights_resident and w_full_bytes > (2 << 20)
    w_buffers = 1 if single_buffer_w else 2
    w_vmem = w_buffers * KD * tn * w_isz + 2 * tn * w_isz  # weights + bias

    # --- M tiling: as large as the budget allows; >= 2 steps for v7x megacore -
    per_row = 2 * KD * in_isz + 2 * tn * out_isz  # double-buffered x + out
    rem = budget - w_vmem - (4 << 20)             # slack for Mosaic scratch
    tm_budget = max(8, rem // per_row) if rem > 0 else 8
    tm = 2048 if tile_m is None else _round_up(int(tile_m), 8)
    tm = min(tm, int(tm_budget))
    tm = min(tm, _round_up(pl.cdiv(M, 2), 8))  # guarantee >= 2 M grid steps
    tm = max(8, tm)
    tm = (tm // 256) * 256 if tm >= 256 else tm  # MXU M-granularity when large
    m_tiles = pl.cdiv(M, tm)

    est_vmem = w_vmem + 2 * tm * KD * in_isz + 2 * tm * tn * out_isz
    vmem_limit = min(max(int(est_vmem * 1.25) + (2 << 20), 32 << 20), budget)
    vmem_limit = max(vmem_limit, est_vmem + (1 << 20))

    cost = pl.CostEstimate(
        flops=2 * M * KD * Dp,
        transcendentals=0,
        bytes_accessed=(M * KD * in_isz
                        + (m_tiles if n_tiles > 1 else 1) * w_full_bytes
                        + M * Dp * out_isz),
    )

    def _resident_spec(shape, index_map):
        # Single-buffer constant-index blocks when large; fall back silently if
        # this jax version lacks pipeline_mode / Buffered.
        if single_buffer_w:
            try:
                return pl.BlockSpec(shape, index_map, pipeline_mode=pl.Buffered(1))
            except (TypeError, AttributeError):
                pass
        return pl.BlockSpec(shape, index_map)

    out = pl.pallas_call(
        functools.partial(conv_compress_kernel, compute_dtype=compute_dtype),
        out_shape=jax.ShapeDtypeStruct((M, Dp), out_dtype),
        grid=(m_tiles, n_tiles),
        in_specs=[
            pl.BlockSpec((tm, KD), lambda i, j: (i, 0)),    # stream x tiles
            _resident_spec((KD, tn), lambda i, j: (0, j)),  # weights
            _resident_spec((1, tn), lambda i, j: (0, j)),   # bias
        ],
        out_specs=pl.BlockSpec((tm, tn), lambda i, j: (i, j)),
        compiler_params=pltpu.CompilerParams(
            dimension_semantics=("parallel", "parallel"),
            vmem_limit_bytes=int(vmem_limit),
        ),
        cost_estimate=cost,
    )(x, w_mat, b_row)

    out = out.reshape(B, L_out, Dp)
    if Dp != D:
        # TODO(synk): let downstream consume the Dp-padded output and slice
        # lazily to avoid this extra HBM pass over the (smaller) output tensor.
        out = out[:, :, :D]
    return out


def conv_compress(mem, conv_weight, conv_bias, **kwargs):
    """Convenience wrapper matching ConvCompress.forward semantics.
    Prefer hoisting prepare_conv_params() out of the per-step path."""
    w_mat, b_row = prepare_conv_params(conv_weight, conv_bias)
    return conv_compress_prepared(mem, w_mat, b_row, **kwargs)


def conv_compress_ref(mem, conv_weight, conv_bias):
    """Plain-JAX reference matching PyTorch Conv1d(stride=3, k=3) semantics."""
    B, L, D = mem.shape
    L_out = (L - K) // K + 1
    x = mem[:, : L_out * K, :].reshape(B, L_out, K, D)
    # out[b, t, co] = sum_{k, ci} x[b, t, k, ci] * W[co, ci, k] + bias[co]
    return jnp.einsum("btkc,ock->bto", x, conv_weight) + conv_bias[None, None, :]


if __name__ == "__main__":
    key = jax.random.PRNGKey(0)
    k_mem, k_w, k_b = jax.random.split(key, 3)

    # ---- Case 1: D multiple of 128, f32 exact path --------------------------
    B, L, D = 2, 48, 128
    mem = jax.random.normal(k_mem, (B, L, D), dtype=jnp.float32)
    fan_in = D * K
    bound = 1.0 / jnp.sqrt(jnp.float32(fan_in))
    conv_weight = jax.random.uniform(
        k_w, (D, D, K), dtype=jnp.float32, minval=-bound, maxval=bound)
    conv_bias = jax.random.uniform(
        k_b, (D,), dtype=jnp.float32, minval=-bound, maxval=bound)

    w_mat, b_row = prepare_conv_params(conv_weight, conv_bias)
    ref = conv_compress_ref(mem, conv_weight, conv_bias)

    out = jax.block_until_ready(conv_compress_prepared(mem, w_mat, b_row))
    assert out.shape == (B, L // K, D), out.shape
    assert jnp.allclose(out, ref, atol=1e-5, rtol=1e-5), "f32 mismatch vs reference"

    # ---- Case 2: bf16 end-to-end I/O (halves HBM traffic on the mem-bound path)
    mem_bf16 = mem.astype(jnp.bfloat16)
    w_mat_bf16, b_row_f32 = prepare_conv_params(conv_weight, conv_bias,
                                                weight_dtype=jnp.bfloat16)
    out_bf16 = jax.block_until_ready(
        conv_compress_prepared(mem_bf16, w_mat_bf16, b_row_f32))
    assert out_bf16.dtype == jnp.bfloat16
    assert jnp.allclose(out_bf16.astype(jnp.float32), ref,
                        atol=5e-2, rtol=5e-2), "bf16 I/O mismatch vs reference"

    # ---- Case 3: bf16 MXU operands from f32 inputs (v5e-friendly) -----------
    out_cd = jax.block_until_ready(
        conv_compress_prepared(mem, w_mat, b_row, compute_dtype=jnp.bfloat16))
    assert jnp.allclose(out_cd, ref, atol=3e-2, rtol=3e-2), "compute_dtype mismatch"

    # ---- Case 4: D not a multiple of 128, L not a multiple of 3 -------------
    # (un-padded activations, padded weight output channels, partial M tile)
    B2, L2, D2 = 3, 35, 96
    bound2 = 1.0 / jnp.sqrt(jnp.float32(D2 * K))
    mem2 = jax.random.normal(k_mem, (B2, L2, D2), dtype=jnp.float32)
    w2 = jax.random.uniform(k_w, (D2, D2, K), dtype=jnp.float32,
                            minval=-bound2, maxval=bound2)
    b2 = jax.random.uniform(k_b, (D2,), dtype=jnp.float32,
                            minval=-bound2, maxval=bound2)
    w_mat2, b_row2 = prepare_conv_params(w2, b2)
    out2 = jax.block_until_ready(conv_compress_prepared(mem2, w_mat2, b_row2))
    L_out2 = (L2 - K) // K + 1
    assert out2.shape == (B2, L_out2, D2), out2.shape
    assert jnp.allclose(out2, conv_compress_ref(mem2, w2, b2),
                        atol=1e-5, rtol=1e-5), "padded-D / tail-L mismatch"

    print("KERNEL_OK")
</pallas_src>

<mosaic_0001>
module attributes {stable_mosaic.version = 11 : i64} {
  func.func @conv_compress_kernel(%arg0: i32, %arg1: i32, %arg2: memref<16x384xf32, #tpu.memory_space<vmem>>, %arg3: memref<384x128xf32, #tpu.memory_space<vmem>>, %arg4: memref<1x128xf32, #tpu.memory_space<vmem>>, %arg5: memref<16x128xf32, #tpu.memory_space<vmem>>) attributes {dimension_semantics = [#tpu.dimension_semantics<parallel>, #tpu.dimension_semantics<parallel>], iteration_bounds = array<i64: 2, 1>, scalar_prefetch = 0 : i64, scratch_operands = 0 : i64, tpu.core_type = #tpu.core_type<tc>, window_params = [{transform_indices = @transform_0, window_bounds = array<i64: 16, 384>}, {transform_indices = @transform_1, window_bounds = array<i64: 384, 128>}, {transform_indices = @transform_2, window_bounds = array<i64: 1, 128>}, {transform_indices = @transform_3, window_bounds = array<i64: 16, 128>}]} {
    %c0 = arith.constant 0 : index
    %c0_0 = arith.constant 0 : index
    %0 = vector.load %arg2[%c0, %c0_0] : memref<16x384xf32, #tpu.memory_space<vmem>>, vector<16x384xf32>
    %c0_1 = arith.constant 0 : index
    %c0_2 = arith.constant 0 : index
    %1 = vector.load %arg3[%c0_1, %c0_2] : memref<384x128xf32, #tpu.memory_space<vmem>>, vector<384x128xf32>
    %cst = arith.constant dense<0.000000e+00> : vector<16x128xf32>
    %2 = tpu.matmul %0, %1, %cst {dimension_numbers = #tpu.dot_dimension_numbers<[1], [0], [0], [1], [0, 0, 1, 1], [], []>} : vector<16x384xf32>, vector<384x128xf32>, vector<16x128xf32> -> vector<16x128xf32>
    %c0_3 = arith.constant 0 : index
    %c0_4 = arith.constant 0 : index
    %3 = vector.load %arg4[%c0_3, %c0_4] : memref<1x128xf32, #tpu.memory_space<vmem>>, vector<1x128xf32>
    %4 = vector.broadcast %3 : vector<1x128xf32> to vector<16x128xf32>
    %5 = arith.addf %2, %4 : vector<16x128xf32>
    %c0_5 = arith.constant 0 : index
    %c0_6 = arith.constant 0 : index
    %6 = vector.load %arg5[%c0_5, %c0_6] : memref<16x128xf32, #tpu.memory_space<vmem>>, vector<16x128xf32>
    tpu.vector_store %arg5[%c0_5, %c0_6], %5 {strides = array<i32>} : memref<16x128xf32, #tpu.memory_space<vmem>>, vector<16x128xf32>,
    return
  }
  func.func @transform_0(%arg0: i32, %arg1: i32) -> (i32, i32) {
    %c0_i32 = arith.constant 0 : i32
    %c0_i32_0 = arith.constant 0 : i32
    return %arg0, %c0_i32 : i32, i32
  }
  func.func @transform_1(%arg0: i32, %arg1: i32) -> (i32, i32) {
    %c0_i32 = arith.constant 0 : i32
    %c0_i32_0 = arith.constant 0 : i32
    return %c0_i32, %arg1 : i32, i32
  }
  func.func @transform_2(%arg0: i32, %arg1: i32) -> (i32, i32) {
    %c0_i32 = arith.constant 0 : i32
    %c0_i32_0 = arith.constant 0 : i32
    return %c0_i32, %arg1 : i32, i32
  }
  func.func @transform_3(%arg0: i32, %arg1: i32) -> (i32, i32) {
    %c0_i32 = arith.constant 0 : i32
    return %arg0, %arg1 : i32, i32
  }
}

</mosaic_0001>

<llo_original>
// kernel: tpu_custom_call.1
$region0: #{tpu_custom_call.1}
  #allocation0 [shape = 'u32[]', space=smem, size = 0x4, offset = 0x4, fixed_abs, tag = 'smem constant byte address 0x4 - core index']
  #allocation1 [shape = 'u32[144,128]{1,0:T(1,128)}', space=vmem, size = 0x12000, scoped, tag = 'internal scratch']
  %s0 = inlined_call_operand.hbm [shape: f32[32,384], index: 0, kind: input, shape index: {}]
  %s1 = inlined_call_operand.hbm [shape: f32[384,128], index: 1, kind: input, shape index: {}]
  %s2 = inlined_call_operand.vmem [shape: f32[1,128], index: 2, kind: input, shape index: {}]
  %s3 = inlined_call_operand.hbm [shape: f32[32,128], index: 3, kind: output, shape index: {}]
  %s4 = sld [smem:[#allocation0]]
  $region53: #{tpu_custom_call.1} parent=0
    _
  %s6 = ssub.s32 1, %s4
  %s7 = scalar_select 0, %s6, %s4
  $region1: #{tpu_custom_call.1} parent=0
    #allocation2 [shape = 'u8[49152]{0}', space=vmem, size = 0xc000, scoped, tag = 'input window, operand 0']
    #allocation3 [shape = 's32[2]{0}', space=sflag, size = 0x8, scoped, tag = 'scoped memory for tpu_custom_call.1']
    #allocation4 [shape = 's32[2]{0}', space=sflag, size = 0x8, scoped, tag = 'scoped memory for tpu_custom_call.1']
    #allocation5 [shape = 'u8[196608]{0}', space=vmem, size = 0x30000, scoped, tag = 'input window, operand 1, single buffered']
    #allocation6 [shape = 's32[1]{0}', space=sflag, size = 0x4, scoped, tag = 'scoped memory for tpu_custom_call.1']
    #allocation7 [shape = 'u8[16384]{0}', space=vmem, size = 0x4000, scoped, tag = 'output window, operand 0']
    %8 = vsyncpa [#allocation3], 0
    %s9 = scalar_lea.sflag [#allocation3], 1
    %10 = vsyncpa %s9, 0
    %11 = vsyncpa [#allocation6], 0
    %12 = vsyncpa [#allocation4], 0
    %s13 = scalar_lea.sflag [#allocation4], 1
    %14 = vsyncpa %s13, 0
    loop: start=0, step=1, limit=4
    $region2: #{tpu_custom_call.1} parent=1 // loop_pre_header
      _
    $region3: #{tpu_custom_call.1} parent=1 // loop_header
      %s16 = sphi 0, %s20
      %p17 = scmp.ge.s32.totalorder %s16, 4
      %s23 = sphi 0, %s35
      %s24 = sphi 0, %s31
      %s25 = sphi 0, %s23
      %s26 = sphi 0, %s24
      %s27 = sphi 0, %s25
      %s28 = sphi 0, %s26
      %s38 = sphi 0, %s40
      %s41 = sphi 0, %s38
      %s42 = sphi 0, %s41
      %s58 = sphi 0, %s42
      %s64 = sphi 0, %s66
      %s67 = sphi 0, %s64
      %s68 = sphi 0, %s67
      %s84 = sphi 0, %s68
      %s90 = sphi 0, %s92
      %s93 = sphi 0, %s90
      %s94 = sphi 0, %s93
      %s110 = sphi 0, %s94
      %s118 = sphi 0, %s120
      %s121 = sphi 0, %s118
      %s122 = sphi 0, %s121
      %s138 = sphi 0, %s122
    $region4: #{tpu_custom_call.1} parent=1 // loop_header_branch
      %19 = sbr.rel (%p17) target = $region8
    $region5: #{tpu_custom_call.1} parent=1 // loop_body
      %s21 = ssub.s32 %s16, 1
      %s22 = ssub.s32 %s16, 2
      %s29 = sadd.s32 1, %s24
      %p30 = scmp.ge.s32.totalorder %s29, 1
      %s31 = scalar_select %p30, 0, %s29
      %s32 = sadd.s32 1, %s23
      %s33 = scalar_select %p30, %s32, %s23
      %p34 = scmp.ge.s32.totalorder %s33, 2
      %s35 = scalar_select %p34, 0, %s33
      %s36 = ssub.s32 %s23, %s35
      %p37 = scmp.eq.s32.totalorder %s36, 0
      %s39 = sadd.s32 %s38, 1
      %s40 = scalar_select %p37, %s38, %s39
      %p43 = pneg %p37
      %p44 = scmp.eq.s32.totalorder %s16, 1
      %p45 = por %p43, %p44
      %p46 = scmp.ne.s32.totalorder %s38, %s41
      %p47 = scmp.eq.s32.totalorder %s16, 0
      %p48 = por %p46, %p47
      %p49 = scmp.ne.s32.totalorder %s38, %s41
      %p50 = scmp.eq.s32.totalorder %s21, 1
      %p51 = por %p49, %p50
      %p52 = scmp.ne.s32.totalorder %s41, %s42
      %p53 = scmp.eq.s32.totalorder %s21, 0
      %p54 = por %p52, %p53
      %p55 = scmp.ne.s32.totalorder %s41, %s42
      %p56 = scmp.eq.s32.totalorder %s22, 1
      %p57 = por %p55, %p56
      %p59 = scmp.ne.s32.totalorder %s42, %s58
      %p60 = scmp.eq.s32.totalorder %s22, 0
      %p61 = por %p59, %p60
      %s62 = ssub.s32 %s24, %s31
      %p63 = scmp.eq.s32.totalorder %s62, 0
      %s65 = sadd.s32 %s64, 1
      %s66 = scalar_select %p63, %s64, %s65
      %p69 = pneg %p63
      %p70 = scmp.eq.s32.totalorder %s16, 1
      %p71 = por %p69, %p70
      %p72 = scmp.ne.s32.totalorder %s64, %s67
      %p73 = scmp.eq.s32.totalorder %s16, 0
      %p74 = por %p72, %p73
      %p75 = scmp.ne.s32.totalorder %s64, %s67
      %p76 = scmp.eq.s32.totalorder %s21, 1
      %p77 = por %p75, %p76
      %p78 = scmp.ne.s32.totalorder %s67, %s68
      %p79 = scmp.eq.s32.totalorder %s21, 0
      %p80 = por %p78, %p79
      %p81 = scmp.ne.s32.totalorder %s67, %s68
      %p82 = scmp.eq.s32.totalorder %s22, 1
      %p83 = por %p81, %p82
      %p85 = scmp.ne.s32.totalorder %s68, %s84
      %p86 = scmp.eq.s32.totalorder %s22, 0
      %p87 = por %p85, %p86
      %s88 = ssub.s32 %s24, %s31
      %p89 = scmp.eq.s32.totalorder %s88, 0
      %s91 = sadd.s32 %s90, 1
      %s92 = scalar_select %p89, %s90, %s91
      %p95 = pneg %p89
      %p96 = scmp.eq.s32.totalorder %s16, 1
      %p97 = por %p95, %p96
      %p98 = scmp.ne.s32.totalorder %s90, %s93
      %p99 = scmp.eq.s32.totalorder %s16, 0
      %p100 = por %p98, %p99
      %p101 = scmp.ne.s32.totalorder %s90, %s93
      %p102 = scmp.eq.s32.totalorder %s21, 1
      %p103 = por %p101, %p102
      %p104 = scmp.ne.s32.totalorder %s93, %s94
      %p105 = scmp.eq.s32.totalorder %s21, 0
      %p106 = por %p104, %p105
      %p107 = scmp.ne.s32.totalorder %s93, %s94
      %p108 = scmp.eq.s32.totalorder %s22, 1
      %p109 = por %p107, %p108
      %p111 = scmp.ne.s32.totalorder %s94, %s110
      %p112 = scmp.eq.s32.totalorder %s22, 0
      %p113 = por %p111, %p112
      %s114 = ssub.s32 %s23, %s35
      %s115 = ssub.s32 %s24, %s31
      %s116 = sor.u32 %s114, %s115
      %p117 = scmp.eq.s32.totalorder %s116, 0
      %s119 = sadd.s32 %s118, 1
      %s120 = scalar_select %p117, %s118, %s119
      %p123 = pneg %p117
      %p124 = scmp.eq.s32.totalorder %s16, 1
      %p125 = por %p123, %p124
      %p126 = scmp.ne.s32.totalorder %s118, %s121
      %p127 = scmp.eq.s32.totalorder %s16, 0
      %p128 = por %p126, %p127
      %p129 = scmp.ne.s32.totalorder %s118, %s121
      %p130 = scmp.eq.s32.totalorder %s21, 1
      %p131 = por %p129, %p130
      %p132 = scmp.ne.s32.totalorder %s121, %s122
      %p133 = scmp.eq.s32.totalorder %s21, 0
      %p134 = por %p132, %p133
      %p135 = scmp.ne.s32.totalorder %s121, %s122
      %p136 = scmp.eq.s32.totalorder %s22, 1
      %p137 = por %p135, %p136
      %p139 = scmp.ne.s32.totalorder %s122, %s138
      %p140 = scmp.eq.s32.totalorder %s22, 0
      %p141 = por %p139, %p140
      %p142 = scmp.le.s32.totalorder 1, %s16
      %p143 = scmp.lt.s32.totalorder %s16, 3
      %p144 = pnand %p142, %p143
      %p145 = pneg %p144
      // Predicated region
      $region9: #{tpu_custom_call.1} parent=5 // pred_check
        _
      $region10: #{tpu_custom_call.1} parent=5 // pred_check_branch
        %147 = sbr.rel (%p144) target = $region12
      $region11: #{tpu_custom_call.1} parent=5 // pred_region
        %s148 = ssub.s32 %s16, 1
        // Predicated region
        $region13: #{tpu_custom_call.1} parent=11 // pred_check
          %p149 = pneg %p80
        $region14: #{tpu_custom_call.1} parent=11 // pred_check_branch
          %151 = sbr.rel (%p149) target = $region16
        $region15: #{tpu_custom_call.1} parent=11 // pred_region
          %s153 = ssub.s32 6144, 6144
          %154 = vsyncadd [#allocation6], %s153
          %s155 = smul.addr %s26, 128
          %s156 = scalar_lea.hbm %s1, %s155
          %s157 = sshll.u32 [#allocation5], 4
          %s158 = int_to_ptr.vmem [resolvable:$true] %s157
          %163 = dma.hbm_to_vmem [thread:$0]  %s156, 6144, %s158, [#allocation6], 128, 128, 8
        $region16: #{tpu_custom_call.1} parent=11 // pred_fallthru
          _
        // Predicated region
        $region17: #{tpu_custom_call.1} parent=11 // pred_check
          %p164 = pneg %p106
        $region18: #{tpu_custom_call.1} parent=11 // pred_check_branch
          %166 = sbr.rel (%p164) target = $region20
        $region19: #{tpu_custom_call.1} parent=11 // pred_region
          %p167 = scmp.lt.s32.totalorder %s26, 0
          %s168 = scalar_select %p167, %s26, 0
          %s169 = scalar_lea.vmem %s2, %s168
        $region20: #{tpu_custom_call.1} parent=11 // pred_fallthru
          _
      $region12: #{tpu_custom_call.1} parent=5 // pred_fallthru
        _
      %p170 = scmp.lt.s32.totalorder %s16, 2
      // Predicated region
      $region21: #{tpu_custom_call.1} parent=5 // pred_check
        %p171 = pneg %p170
      $region22: #{tpu_custom_call.1} parent=5 // pred_check_branch
        %173 = sbr.rel (%p171) target = $region24
      $region23: #{tpu_custom_call.1} parent=5 // pred_region
        // Predicated region
        $region25: #{tpu_custom_call.1} parent=23 // pred_check
          %p174 = pneg %p48
        $region26: #{tpu_custom_call.1} parent=23 // pred_check_branch
          %176 = sbr.rel (%p174) target = $region28
        $region27: #{tpu_custom_call.1} parent=23 // pred_region
          %s177 = sand.u32 %s38, 1
          %s178 = scalar_lea.sflag [#allocation3], %s177
          %s179 = sand.u32 %s38, 1
          %s180 = smul.addr %s179, 48
          %s181 = scalar_lea.vmem [#allocation2], %s180
          %s182 = smul.u32 2, %s23
          %s184 = ssub.s32 768, 768
          %185 = vsyncadd %s178, %s184
          %s186 = smul.addr %s182, 3
          %s187 = smul.addr %s186, 128
          %s188 = scalar_lea.hbm %s0, %s187
          %s189 = sshll.u32 %s181, 4
          %s190 = int_to_ptr.vmem [resolvable:$true] %s189
          %195 = dma.hbm_to_vmem [thread:$0]  %s188, 768, %s190, %s178, 384, 384, 24
        $region28: #{tpu_custom_call.1} parent=23 // pred_fallthru
          _
      $region24: #{tpu_custom_call.1} parent=5 // pred_fallthru
        _
      %p196 = scmp.le.s32.totalorder 1, %s16
      %p197 = scmp.lt.s32.totalorder %s16, 3
      %p198 = pnand %p196, %p197
      %p199 = pneg %p198
      // Predicated region
      $region29: #{tpu_custom_call.1} parent=5 // pred_check
        _
      $region30: #{tpu_custom_call.1} parent=5 // pred_check_branch
        %201 = sbr.rel (%p198) target = $region32
      $region31: #{tpu_custom_call.1} parent=5 // pred_region
        %s202 = ssub.s32 %s16, 1
        %s203 = sand.u32 %s41, 1
        %s204 = scalar_lea.sflag [#allocation3], %s203
        %s205 = sand.u32 %s41, 1
        %s206 = smul.addr %s205, 48
        %s207 = scalar_lea.vmem [#allocation2], %s206
        // Predicated region
        $region33: #{tpu_custom_call.1} parent=31 // pred_check
          %p208 = pneg %p54
        $region34: #{tpu_custom_call.1} parent=31 // pred_check_branch
          %210 = sbr.rel (%p208) target = $region36
        $region35: #{tpu_custom_call.1} parent=31 // pred_region
          %211 = dma.done %s204, 768
        $region36: #{tpu_custom_call.1} parent=31 // pred_fallthru
          _
        // Predicated region
        $region37: #{tpu_custom_call.1} parent=31 // pred_check
          %p212 = pneg %p80
        $region38: #{tpu_custom_call.1} parent=31 // pred_check_branch
          %214 = sbr.rel (%p212) target = $region40
        $region39: #{tpu_custom_call.1} parent=31 // pred_region
          %215 = dma.done [#allocation6], 6144
        $region40: #{tpu_custom_call.1} parent=31 // pred_fallthru
          _
        %s216 = sand.u32 %s41, 1
        %s217 = scalar_lea.sflag [#allocation3], %s216
        %s218 = sand.u32 %s41, 1
        %s219 = smul.addr %s218, 48
        %s220 = scalar_lea.vmem [#allocation2], %s219
        %p221 = pneg %p54
        %p222 = pneg %p51
        %p223 = pneg %p80
        %p224 = pneg %p77
        %p225 = scmp.lt.s32.totalorder %s26, 0
        %s226 = scalar_select %p225, %s26, 0
        %s227 = scalar_lea.vmem %s2, %s226
        %p228 = pneg %p106
        %p229 = pneg %p103
        %p230 = pneg %p134
        %p231 = pneg %p131
        %s232 = sand.u32 %s121, 1
        %s233 = scalar_lea.sflag [#allocation4], %s232
        %s234 = sand.u32 %s121, 1
        %s235 = smul.addr %s234, 16
        %s236 = scalar_lea.vmem [#allocation7], %s235
        %s237 = smul.u32 2, %s25
        %p238 = scmp.lt.s32.totalorder %s26, 0
        %s239 = scalar_select %p238, %s26, 0
        %s240 = scalar_lea.vmem %s2, %s239
        %s241 = smul.u32 2, %s25
        %v242 = vld [vmem:[%s207] sm:$0xff]
        %v243 = vld [vmem:[%s207 + $0x8] sm:$0xff]
        %v244 = vld [vmem:[%s207 + $0x10] sm:$0xff]
        %v245 = vld [vmem:[%s207 + $0x18] sm:$0xff]
        %v246 = vld [vmem:[%s207 + $0x20] sm:$0xff]
        %v247 = vld [vmem:[%s207 + $0x28] sm:$0xff]
        %v248 = vld [vmem:[#allocation5] sm:$0xff]
        %v249 = vld [vmem:[#allocation5 + $0x8] sm:$0xff]
        %v250 = vld [vmem:[#allocation5 + $0x10] sm:$0xff]
        %v251 = vld [vmem:[#allocation5 + $0x18] sm:$0xff]
        %v252 = vld [vmem:[#allocation5 + $0x20] sm:$0xff]
        %v253 = vld [vmem:[#allocation5 + $0x28] sm:$0xff]
        %v254 = vld [vmem:[#allocation5 + $0x30] sm:$0xff]
        %v255 = vld [vmem:[#allocation5 + $0x38] sm:$0xff]
        %v256 = vld [vmem:[#allocation5 + $0x40] sm:$0xff]
        %v257 = vld [vmem:[#allocation5 + $0x48] sm:$0xff]
        %v258 = vld [vmem:[#allocation5 + $0x50] sm:$0xff]
        %v259 = vld [vmem:[#allocation5 + $0x58] sm:$0xff]
        %v260 = vld [vmem:[#allocation5 + $0x60] sm:$0xff]
        %v261 = vld [vmem:[#allocation5 + $0x68] sm:$0xff]
        %v262 = vld [vmem:[#allocation5 + $0x70] sm:$0xff]
        %v263 = vld [vmem:[#allocation5 + $0x78] sm:$0xff]
        %v264 = vld [vmem:[#allocation5 + $0x80] sm:$0xff]
        %v265 = vld [vmem:[#allocation5 + $0x88] sm:$0xff]
        %v266 = vld [vmem:[#allocation5 + $0x90] sm:$0xff]
        %v267 = vld [vmem:[#allocation5 + $0x98] sm:$0xff]
        %v268 = vld [vmem:[#allocation5 + $0xa0] sm:$0xff]
        %v269 = vld [vmem:[#allocation5 + $0xa8] sm:$0xff]
        %v270 = vld [vmem:[#allocation5 + $0xb0] sm:$0xff]
        %v271 = vld [vmem:[#allocation5 + $0xb8] sm:$0xff]
        %v272 = vld [vmem:[#allocation5 + $0xc0] sm:$0xff]
        %v273 = vld [vmem:[#allocation5 + $0xc8] sm:$0xff]
        %v274 = vld [vmem:[#allocation5 + $0xd0] sm:$0xff]
        %v275 = vld [vmem:[#allocation5 + $0xd8] sm:$0xff]
        %v276 = vld [vmem:[#allocation5 + $0xe0] sm:$0xff]
        %v277 = vld [vmem:[#allocation5 + $0xe8] sm:$0xff]
        %v278 = vld [vmem:[#allocation5 + $0xf0] sm:$0xff]
        %v279 = vld [vmem:[#allocation5 + $0xf8] sm:$0xff]
        %v280 = vld [vmem:[#allocation5 + $0x100] sm:$0xff]
        %v281 = vld [vmem:[#allocation5 + $0x108] sm:$0xff]
        %v282 = vld [vmem:[#allocation5 + $0x110] sm:$0xff]
        %v283 = vld [vmem:[#allocation5 + $0x118] sm:$0xff]
        %v284 = vld [vmem:[#allocation5 + $0x120] sm:$0xff]
        %v285 = vld [vmem:[#allocation5 + $0x128] sm:$0xff]
        %v286 = vld [vmem:[#allocation5 + $0x130] sm:$0xff]
        %v287 = vld [vmem:[#allocation5 + $0x138] sm:$0xff]
        %v288 = vld [vmem:[#allocation5 + $0x140] sm:$0xff]
        %v289 = vld [vmem:[#allocation5 + $0x148] sm:$0xff]
        %v290 = vld [vmem:[#allocation5 + $0x150] sm:$0xff]
        %v291 = vld [vmem:[#allocation5 + $0x158] sm:$0xff]
        %v292 = vld [vmem:[#allocation5 + $0x160] sm:$0xff]
        %v293 = vld [vmem:[#allocation5 + $0x168] sm:$0xff]
        %v294 = vld [vmem:[#allocation5 + $0x170] sm:$0xff]
        %v295 = vld [vmem:[#allocation5 + $0x178] sm:$0xff]
        %v296 = vld [vmem:[%s240] sm:$0x1]
        %v298 = vlaneseq
        %v299 = vshrl.u32 %v298, 7
        %v300 = vsub.s32 0, %v299
        %v301 = vrot.slane %v296, %v300
        %303 = vmatprep.subr.mxu0 0.0
        %304 = vmatpush1.msra.mxu0 %v248
        %305 = vmatprep.subr.mxu0 0.0
        %306 = vmatpush1.msra.mxu0 %v249
        %307 = vmatprep.subr.mxu0 0.0
        %308 = vmatpush1.msra.mxu0 %v250
        %309 = vmatprep.subr.mxu0 0.0
        %310 = vmatpush1.msra.mxu0 %v251
        %311 = vmatprep.subr.mxu0 0.0
        %312 = vmatpush1.msra.mxu0 %v252
        %313 = vmatprep.subr.mxu0 0.0
        %314 = vmatpush1.msra.mxu0 %v253
        %315 = vmatprep.subr.mxu0 0.0
        %316 = vmatpush1.msra.mxu0 %v254
        %317 = vmatprep.subr.mxu0 0.0
        %318 = vmatpush1.msra.mxu0 %v255
        %319 = vmatprep.subr.mxu0 0.0
        %320 = vmatpush1.msra.mxu0 %v256
        %321 = vmatprep.subr.mxu0 0.0
        %322 = vmatpush1.msra.mxu0 %v257
        %323 = vmatprep.subr.mxu0 0.0
        %324 = vmatpush1.msra.mxu0 %v258
        %325 = vmatprep.subr.mxu0 0.0
        %326 = vmatpush1.msra.mxu0 %v259
        %327 = vmatprep.subr.mxu0 0.0
        %328 = vmatpush1.msra.mxu0 %v260
        %329 = vmatprep.subr.mxu0 0.0
        %330 = vmatpush1.msra.mxu0 %v261
        %331 = vmatprep.subr.mxu0 0.0
        %332 = vmatpush1.msra.mxu0 %v262
        %333 = vmatprep.subr.mxu0 0.0
        %334 = vmatpush1.msra.mxu0 %v263
        %335 = vmatprep.subr.mxu0 0.0
        %336 = vmatpush1.msra.mxu0 %v264
        %337 = vmatprep.subr.mxu0 0.0
        %338 = vmatpush1.msra.mxu0 %v265
        %339 = vmatprep.subr.mxu0 0.0
        %340 = vmatpush1.msra.mxu0 %v266
        %341 = vmatprep.subr.mxu0 0.0
        %342 = vmatpush1.msra.mxu0 %v267
        %343 = vmatprep.subr.mxu0 0.0
        %344 = vmatpush1.msra.mxu0 %v268
        %345 = vmatprep.subr.mxu0 0.0
        %346 = vmatpush1.msra.mxu0 %v269
        %347 = vmatprep.subr.mxu0 0.0
        %348 = vmatpush1.msra.mxu0 %v270
        %349 = vmatprep.subr.mxu0 0.0
        %350 = vmatpush1.msra.mxu0 %v271
        %351 = vmatprep.subr.mxu0 0.0
        %352 = vmatpush1.msra.mxu0 %v272
        %353 = vmatprep.subr.mxu0 0.0
        %354 = vmatpush1.msra.mxu0 %v273
        %355 = vmatprep.subr.mxu0 0.0
        %356 = vmatpush1.msra.mxu0 %v274
        %357 = vmatprep.subr.mxu0 0.0
        %358 = vmatpush1.msra.mxu0 %v275
        %359 = vmatprep.subr.mxu0 0.0
        %360 = vmatpush1.msra.mxu0 %v276
        %361 = vmatprep.subr.mxu0 0.0
        %362 = vmatpush1.msra.mxu0 %v277
        %363 = vmatprep.subr.mxu0 0.0
        %364 = vmatpush1.msra.mxu0 %v278
        %365 = vmatprep.subr.mxu0 0.0
        %366 = vmatpush1.msra.mxu0 %v279
        %367 = vmatprep.mubr.f32.mxu0 %v243
        %368 = vmatmul.mubr.f32.gmra.mrb[0].mxu0 %v242
        %v369 = vpop.f32.mrb[0].mxu0
        %v370 = vadd.f32 %v301, %v369
        %v371 = vpop.f32.mrb[0].mxu0
        %372 = vmatprep.mubr.f32.mxu0 %v246
        %373 = vmatmul.mubr.f32.gmra.mrb[0].mxu0 %v245
        %v374 = vpop.f32.mrb[0].mxu0
        %v375 = vadd.f32 %v301, %v374
        %v376 = vpop.f32.mrb[0].mxu0
        %377 = vdwg.mxu0
        %378 = vmatprep.subr.mxu0 0.0
        %379 = vmatpush1.msra.mxu0 %v280
        %380 = vmatprep.subr.mxu0 0.0
        %381 = vmatpush1.msra.mxu0 %v281
        %382 = vmatprep.subr.mxu0 0.0
        %383 = vmatpush1.msra.mxu0 %v282
        %384 = vmatprep.subr.mxu0 0.0
        %385 = vmatpush1.msra.mxu0 %v283
        %386 = vmatprep.subr.mxu0 0.0
        %387 = vmatpush1.msra.mxu0 %v284
        %388 = vmatprep.subr.mxu0 0.0
        %389 = vmatpush1.msra.mxu0 %v285
        %390 = vmatprep.subr.mxu0 0.0
        %391 = vmatpush1.msra.mxu0 %v286
        %392 = vmatprep.subr.mxu0 0.0
        %393 = vmatpush1.msra.mxu0 %v287
        %394 = vmatprep.subr.mxu0 0.0
        %395 = vmatpush1.msra.mxu0 %v288
        %396 = vmatprep.subr.mxu0 0.0
        %397 = vmatpush1.msra.mxu0 %v289
        %398 = vmatprep.subr.mxu0 0.0
        %399 = vmatpush1.msra.mxu0 %v290
        %400 = vmatprep.subr.mxu0 0.0
        %401 = vmatpush1.msra.mxu0 %v291
        %402 = vmatprep.subr.mxu0 0.0
        %403 = vmatpush1.msra.mxu0 %v292
        %404 = vmatprep.subr.mxu0 0.0
        %405 = vmatpush1.msra.mxu0 %v293
        %406 = vmatprep.subr.mxu0 0.0
        %407 = vmatpush1.msra.mxu0 %v294
        %408 = vmatprep.subr.mxu0 0.0
        %409 = vmatpush1.msra.mxu0 %v295
        %410 = vmatprep.subr.mxu0 0.0
        %411 = vmatpush1.msra.mxu0 0.0
        %412 = vmatprep.subr.mxu0 0.0
        %413 = vmatpush1.msra.mxu0 0.0
        %414 = vmatprep.subr.mxu0 0.0
        %415 = vmatpush1.msra.mxu0 0.0
        %416 = vmatprep.subr.mxu0 0.0
        %417 = vmatpush1.msra.mxu0 0.0
        %418 = vmatprep.subr.mxu0 0.0
        %419 = vmatpush1.msra.mxu0 0.0
        %420 = vmatprep.subr.mxu0 0.0
        %421 = vmatpush1.msra.mxu0 0.0
        %422 = vmatprep.subr.mxu0 0.0
        %423 = vmatpush1.msra.mxu0 0.0
        %424 = vmatprep.subr.mxu0 0.0
        %425 = vmatpush1.msra.mxu0 0.0
        %426 = vmatprep.subr.mxu0 0.0
        %427 = vmatpush1.msra.mxu0 0.0
        %428 = vmatprep.subr.mxu0 0.0
        %429 = vmatpush1.msra.mxu0 0.0
        %430 = vmatprep.subr.mxu0 0.0
        %431 = vmatpush1.msra.mxu0 0.0
        %432 = vmatprep.subr.mxu0 0.0
        %433 = vmatpush1.msra.mxu0 0.0
        %434 = vmatprep.subr.mxu0 0.0
        %435 = vmatpush1.msra.mxu0 0.0
        %436 = vmatprep.subr.mxu0 0.0
        %437 = vmatpush1.msra.mxu0 0.0
        %438 = vmatprep.subr.mxu0 0.0
        %439 = vmatpush1.msra.mxu0 0.0
        %440 = vmatprep.subr.mxu0 0.0
        %441 = vmatpush1.msra.mxu0 0.0
        %442 = vmatprep.mubr.f32.mxu0 0.0
        %443 = vmatmul.mubr.f32.gmra.mrb[0].mxu0 %v244
        %v444 = vpop.f32.mrb[0].mxu0
        %v445 = vadd.f32 %v370, %v444
        %v446 = vpop.f32.mrb[0].mxu0
        %447 = vmatprep.mubr.f32.mxu0 0.0
        %448 = vmatmul.mubr.f32.gmra.mrb[0].mxu0 %v247
        %v449 = vpop.f32.mrb[0].mxu0
        %v450 = vadd.f32 %v375, %v449
        %v451 = vpop.f32.mrb[0].mxu0
        %452 = vdwg.mxu0
        %453 = vst [vmem:[%s236] sm:$0xff] %v445
        %454 = vst [vmem:[%s236 + $0x8] sm:$0xff] %v450
        %s455 = sand.u32 %s121, 1
        %s456 = scalar_lea.sflag [#allocation4], %s455
        %s457 = sand.u32 %s121, 1
        %s458 = smul.addr %s457, 16
        %s459 = scalar_lea.vmem [#allocation7], %s458
        // Predicated region
        $region41: #{tpu_custom_call.1} parent=31 // pred_check
          %p460 = pneg %p131
        $region42: #{tpu_custom_call.1} parent=31 // pred_check_branch
          %462 = sbr.rel (%p460) target = $region44
        $region43: #{tpu_custom_call.1} parent=31 // pred_region
          %s463 = smul.u32 2, %s25
          %s465 = ssub.s32 256, 256
          %466 = vsyncadd %s456, %s465
          %s467 = sadd.s32 %s26, %s463
          %s468 = smul.addr %s467, 128
          %s469 = scalar_lea.hbm %s3, %s468
          %s470 = sshll.u32 %s459, 4
          %s471 = int_to_ptr.vmem [resolvable:$true] %s470
          %476 = dma.vmem_to_hbm [thread:$0]  %s471, 256, %s469, %s456, 128, 128, 8
        $region44: #{tpu_custom_call.1} parent=31 // pred_fallthru
          _
      $region32: #{tpu_custom_call.1} parent=5 // pred_fallthru
        _
      %p477 = scmp.le.s32.totalorder 2, %s16
      // Predicated region
      $region45: #{tpu_custom_call.1} parent=5 // pred_check
        %p478 = pneg %p477
      $region46: #{tpu_custom_call.1} parent=5 // pred_check_branch
        %480 = sbr.rel (%p478) target = $region48
      $region47: #{tpu_custom_call.1} parent=5 // pred_region
        %s481 = ssub.s32 %s16, 2
        // Predicated region
        $region49: #{tpu_custom_call.1} parent=47 // pred_check
          %p482 = pneg %p137
        $region50: #{tpu_custom_call.1} parent=47 // pred_check_branch
          %484 = sbr.rel (%p482) target = $region52
        $region51: #{tpu_custom_call.1} parent=47 // pred_region
          %s485 = sand.u32 %s122, 1
          %s486 = scalar_lea.sflag [#allocation4], %s485
          %s487 = sand.u32 %s122, 1
          %s488 = smul.addr %s487, 16
          %s489 = scalar_lea.vmem [#allocation7], %s488
          %490 = dma.done %s486, 256
        $region52: #{tpu_custom_call.1} parent=47 // pred_fallthru
          _
      $region48: #{tpu_custom_call.1} parent=5 // pred_fallthru
        _
    $region6: #{tpu_custom_call.1} parent=1 // loop_footer
      %s20 = sadd.s32 1, %s16
    $region7: #{tpu_custom_call.1} parent=1 // loop_footer_branch
      %15 = sbr.rel target = $region3
    $region8: #{tpu_custom_call.1} parent=1 // loop_exit
      _
    %491 = vsyncpa [#allocation3], 1
    %s492 = scalar_lea.sflag [#allocation3], 1
    %493 = vsyncpa %s492, 1
    %494 = vsyncpa [#allocation6], 1
    %495 = vsyncpa [#allocation4], 1
    %s496 = scalar_lea.sflag [#allocation4], 1
    %497 = vsyncpa %s496, 1

</llo_original>
